<compile_context>
chip_gen: v7x
topology: tpu7x:2x2x1
jax: 0.10.0
libtpu: 0.0.40
codegen_flags: <defaults>
</compile_context>

<pallas_src>
import jax
import jax.numpy as jnp
from jax.experimental import pallas as pl
from jax.experimental.pallas import tpu as pltpu


def _round_up(x, m):
    return (x + m - 1) // m * m


def _choose_row_tile(rows):
    # Big tiles amortize per-grid-step overhead (measured ~63% -> ~85% of HBM
    # roofline going 256 -> 512 rows on v6e), but keep >= 4 tiles so both v7x
    # TensorCores get work.  Multiples of 16 for bf16 sublane packing.
    if rows >= 4 * 512:
        return 512
    if rows >= 64:
        return min(512, max(16, _round_up(rows // 4, 16)))
    return _round_up(max(rows, 1), 16)


def _choose_k_tile(kp, max_tk=1024):
    # Largest multiple-of-128 divisor of kp (kp % 128 == 0) that is <= max_tk,
    # so no partial K block ever feeds unzeroed data into the accumulator.
    best, t = 128, 128
    while t <= min(kp, max_tk):
        if kp % t == 0:
            best = t
        t += 128
    return best


def _matmul_bias_kernel(p_ref, w_ref, b_ref, o_ref, acc_ref):
    # p_ref: (TR, TK) bf16 im2col tile     w_ref: (TK, Cp) bf16 folded weights
    # b_ref: (1,  Cp) f32 folded bias      o_ref: (TR, Cp) bf16 (lane-dense)
    # acc_ref: (TR, Cp) f32 scratch accumulator, resident across the K axis.
    k = pl.program_id(1)

    @pl.when(k == 0)
    def _():
        acc_ref[...] = jnp.zeros_like(acc_ref)

    acc_ref[...] += jnp.dot(p_ref[...], w_ref[...],
                            preferred_element_type=jnp.float32)

    @pl.when(k == pl.num_programs(1) - 1)
    def _():
        o_ref[...] = (acc_ref[...] + b_ref[...]).astype(o_ref.dtype)


def downsample_o(x_nchw, w1_hwio, b1, w2_hwio, b2):
    """DownSample_O.forward: 3x3/s2/p1 conv + 5x5/s2/p2 conv, summed. NCHW in/out."""
    N, C, H, W = x_nchw.shape
    Ho, Wo = (H + 1) // 2, (W + 1) // 2        # both convs give the same output size

    # ---- fold the 3x3 conv into the 5x5 conv (identical padded-frame taps) ----
    w5 = w2_hwio.astype(jnp.float32)
    w5 = w5.at[1:4, 1:4, :, :].add(w1_hwio.astype(jnp.float32))      # (5,5,C,C) HWIO
    bias = (b1 + b2).astype(jnp.float32).reshape(1, C)

    rows, K = N * Ho * Wo, 25 * C
    Kp = _round_up(K, 128)            # contraction dim: full MXU lanes, no masking
    Cp = _round_up(C, 128)            # output dim: lane-dense unmasked stores
    TR = _choose_row_tile(rows)
    TK = _choose_k_tile(Kp)
    kt = Kp // TK
    rt = pl.cdiv(rows, TR)            # partial last row tile handled by Pallas masking

    # ---- im2col in bf16: (rows, Kp) slab, tap-major, cin innermost ----
    # TODO(synk): for very large inputs, move the im2col into the kernel (halo'd
    # DMA + strided VMEM reads) to remove the ~6x HBM read amplification of the
    # materialized patch slab.
    x = jnp.transpose(x_nchw, (0, 2, 3, 1)).astype(jnp.bfloat16)      # NHWC, bf16 early
    xpad = jnp.pad(x, ((0, 0), (2, 2), (2, 2), (0, 0)))               # (N, H+4, W+4, C)
    taps = [xpad[:, kh:kh + 2 * Ho:2, kw:kw + 2 * Wo:2, :]
            for kh in range(5) for kw in range(5)]
    if Kp > K:                         # zero K-padding folded into the concat: no extra pad pass
        taps.append(jnp.zeros((N, Ho, Wo, Kp - K), jnp.bfloat16))
    p_mat = jnp.concatenate(taps, axis=-1).reshape(rows, Kp)          # (rows, Kp) bf16

    w_mat = jnp.pad(w5.reshape(K, C),
                    ((0, Kp - K), (0, Cp - C))).astype(jnp.bfloat16)  # (Kp, Cp) bf16
    b_mat = jnp.pad(bias, ((0, 0), (0, Cp - C)))                      # (1, Cp) f32

    # VMEM budget: double-buffered p/w/out tiles + bias + f32 accumulator.
    vmem_need = (2 * TR * TK * 2 + 2 * TK * Cp * 2 + 2 * Cp * 4
                 + 2 * TR * Cp * 2 + TR * Cp * 4)
    vmem_limit = int(min(max(2 * vmem_need, 32 * 1024 * 1024), 48 * 1024 * 1024))

    cost = pl.CostEstimate(
        flops=2 * rows * Kp * Cp,
        bytes_accessed=rows * Kp * 2 + rt * Kp * Cp * 2 + Cp * 4 + rows * Cp * 2,
        transcendentals=0)

    out = pl.pallas_call(
        _matmul_bias_kernel,
        out_shape=jax.ShapeDtypeStruct((rows, Cp), jnp.bfloat16),
        grid=(rt, kt),
        in_specs=[
            pl.BlockSpec((TR, TK), lambda i, k: (i, k)),
            pl.BlockSpec((TK, Cp), lambda i, k: (k, 0)),   # constant when kt==1 -> single DMA
            pl.BlockSpec((1, Cp), lambda i, k: (0, 0)),
        ],
        out_specs=pl.BlockSpec((TR, Cp), lambda i, k: (i, 0)),
        scratch_shapes=[pltpu.VMEM((TR, Cp), jnp.float32)],
        compiler_params=pltpu.CompilerParams(
            dimension_semantics=("parallel", "arbitrary"),  # row tiles shard across v7x TCs
            vmem_limit_bytes=vmem_limit),
        cost_estimate=cost,
    )(p_mat, w_mat, b_mat)

    # TODO(synk): if the consumer can take NHWC, drop this final transpose to
    # save one full output-sized HBM pass.
    y = out[:, :C].reshape(N, Ho, Wo, C)
    return jnp.transpose(y, (0, 3, 1, 2)).astype(x_nchw.dtype)        # back to NCHW


def _ref_forward(x, w1, b1, w2, b2):
    def conv(x, w, b, stride, pad):
        y = jax.lax.conv_general_dilated(
            x, w, (stride, stride), ((pad, pad), (pad, pad)),
            dimension_numbers=("NCHW", "HWIO", "NCHW"),
            precision=jax.lax.Precision.HIGHEST)
        return y + b[None, :, None, None]
    return conv(x, w1, b1, 2, 1) + conv(x, w2, b2, 2, 2)


if __name__ == "__main__":
    key = jax.random.PRNGKey(0)
    kx, k1, k2, k3, k4 = jax.random.split(key, 5)

    N, C, H, W = 2, 4, 16, 16
    x = jax.random.normal(kx, (N, C, H, W), dtype=jnp.float32)

    # Deterministic parameter init (PyTorch Conv2d-style uniform bounds), HWIO.
    fan1 = C * 3 * 3
    bound1 = 1.0 / (fan1 ** 0.5)
    w1 = jax.random.uniform(k1, (3, 3, C, C), jnp.float32, -bound1, bound1)
    b1 = jax.random.uniform(k2, (C,), jnp.float32, -bound1, bound1)

    fan2 = C * 5 * 5
    bound2 = 1.0 / (fan2 ** 0.5)
    w2 = jax.random.uniform(k3, (5, 5, C, C), jnp.float32, -bound2, bound2)
    b2 = jax.random.uniform(k4, (C,), jnp.float32, -bound2, bound2)

    fwd = jax.jit(downsample_o)
    y = fwd(x, w1, b1, w2, b2)
    y = jax.block_until_ready(y)

    y_ref = _ref_forward(x, w1, b1, w2, b2)
    assert y.shape == (N, C, H // 2, W // 2), y.shape
    max_err = float(jnp.max(jnp.abs(y - y_ref)))
    # bf16 activations/weights/output with f32 accumulation -> ~1e-2-level agreement.
    assert jnp.allclose(y, y_ref, atol=5e-2, rtol=5e-2), max_err

    print("KERNEL_OK")
</pallas_src>

<mosaic_0001>
module attributes {stable_mosaic.version = 11 : i64} {
  func.func @_matmul_bias_kernel(%arg0: i32, %arg1: i32, %arg2: memref<32x128xbf16, #tpu.memory_space<vmem>>, %arg3: memref<128x128xbf16, #tpu.memory_space<vmem>>, %arg4: memref<1x128xf32, #tpu.memory_space<vmem>>, %arg5: memref<32x128xbf16, #tpu.memory_space<vmem>>, %arg6: memref<32x128xf32, #tpu.memory_space<vmem>>) attributes {dimension_semantics = [#tpu.dimension_semantics<parallel>, #tpu.dimension_semantics<arbitrary>], iteration_bounds = array<i64: 4, 1>, scalar_prefetch = 0 : i64, scratch_operands = 1 : i64, tpu.core_type = #tpu.core_type<tc>, window_params = [{transform_indices = @transform_0, window_bounds = array<i64: 32, 128>}, {transform_indices = @transform_1, window_bounds = array<i64: 128, 128>}, {pipeline_mode = #tpu.pipeline_mode<synchronous>, transform_indices = @transform_2, window_bounds = array<i64: 1, 128>}, {transform_indices = @transform_3, window_bounds = array<i64: 32, 128>}]} {
    %c0_i32 = arith.constant 0 : i32
    %0 = arith.cmpi eq, %arg1, %c0_i32 : i32
    %1 = arith.extui %0 : i1 to i32
    %c0_i32_0 = arith.constant 0 : i32
    %2 = arith.cmpi ne, %1, %c0_i32_0 : i32
    scf.if %2 {
      %cst_10 = arith.constant 0.000000e+00 : f32
      %12 = vector.broadcast %cst_10 : f32 to vector<32x128xf32>
      %c0_11 = arith.constant 0 : index
      %c0_12 = arith.constant 0 : index
      %13 = vector.load %arg6[%c0_11, %c0_12] : memref<32x128xf32, #tpu.memory_space<vmem>>, vector<32x128xf32>
      tpu.vector_store %arg6[%c0_11, %c0_12], %12 {strides = array<i32>} : memref<32x128xf32, #tpu.memory_space<vmem>>, vector<32x128xf32>,
    } else {
    }
    %c0 = arith.constant 0 : index
    %c0_1 = arith.constant 0 : index
    %3 = vector.load %arg6[%c0, %c0_1] : memref<32x128xf32, #tpu.memory_space<vmem>>, vector<32x128xf32>
    %c0_2 = arith.constant 0 : index
    %c0_3 = arith.constant 0 : index
    %4 = vector.load %arg2[%c0_2, %c0_3] : memref<32x128xbf16, #tpu.memory_space<vmem>>, vector<32x128xbf16>
    %c0_4 = arith.constant 0 : index
    %c0_5 = arith.constant 0 : index
    %5 = vector.load %arg3[%c0_4, %c0_5] : memref<128x128xbf16, #tpu.memory_space<vmem>>, vector<128x128xbf16>
    %cst = arith.constant dense<0.000000e+00> : vector<32x128xf32>
    %6 = tpu.matmul %4, %5, %cst {dimension_numbers = #tpu.dot_dimension_numbers<[1], [0], [0], [1], [0, 0, 1, 1], [], []>} : vector<32x128xbf16>, vector<128x128xbf16>, vector<32x128xf32> -> vector<32x128xf32>
    %7 = arith.addf %3, %6 : vector<32x128xf32>
    %c0_6 = arith.constant 0 : index
    %c0_7 = arith.constant 0 : index
    %8 = vector.load %arg6[%c0_6, %c0_7] : memref<32x128xf32, #tpu.memory_space<vmem>>, vector<32x128xf32>
    tpu.vector_store %arg6[%c0_6, %c0_7], %7 {strides = array<i32>} : memref<32x128xf32, #tpu.memory_space<vmem>>, vector<32x128xf32>,
    %c0_i32_8 = arith.constant 0 : i32
    %9 = arith.cmpi eq, %arg1, %c0_i32_8 : i32
    %10 = arith.extui %9 : i1 to i32
    %c0_i32_9 = arith.constant 0 : i32
    %11 = arith.cmpi ne, %10, %c0_i32_9 : i32
    scf.if %11 {
      %c0_10 = arith.constant 0 : index
      %c0_11 = arith.constant 0 : index
      %12 = vector.load %arg6[%c0_10, %c0_11] : memref<32x128xf32, #tpu.memory_space<vmem>>, vector<32x128xf32>
      %c0_12 = arith.constant 0 : index
      %c0_13 = arith.constant 0 : index
      %13 = vector.load %arg4[%c0_12, %c0_13] : memref<1x128xf32, #tpu.memory_space<vmem>>, vector<1x128xf32>
      %14 = vector.broadcast %13 : vector<1x128xf32> to vector<32x128xf32>
      %15 = arith.addf %12, %14 : vector<32x128xf32>
      %16 = arith.truncf %15 : vector<32x128xf32> to vector<32x128xbf16>
      %c0_14 = arith.constant 0 : index
      %c0_15 = arith.constant 0 : index
      %17 = vector.load %arg5[%c0_14, %c0_15] : memref<32x128xbf16, #tpu.memory_space<vmem>>, vector<32x128xbf16>
      tpu.vector_store %arg5[%c0_14, %c0_15], %16 {strides = array<i32>} : memref<32x128xbf16, #tpu.memory_space<vmem>>, vector<32x128xbf16>,
    } else {
    }
    return
  }
  func.func @transform_0(%arg0: i32, %arg1: i32) -> (i32, i32) {
    %c0_i32 = arith.constant 0 : i32
    return %arg0, %arg1 : i32, i32
  }
  func.func @transform_1(%arg0: i32, %arg1: i32) -> (i32, i32) {
    %c0_i32 = arith.constant 0 : i32
    %c0_i32_0 = arith.constant 0 : i32
    return %arg1, %c0_i32 : i32, i32
  }
  func.func @transform_2(%arg0: i32, %arg1: i32) -> (i32, i32) {
    %c0_i32 = arith.constant 0 : i32
    %c0_i32_0 = arith.constant 0 : i32
    %c0_i32_1 = arith.constant 0 : i32
    return %c0_i32, %c0_i32_0 : i32, i32
  }
  func.func @transform_3(%arg0: i32, %arg1: i32) -> (i32, i32) {
    %c0_i32 = arith.constant 0 : i32
    %c0_i32_0 = arith.constant 0 : i32
    return %arg0, %c0_i32 : i32, i32
  }
}

</mosaic_0001>

<llo_original>
// kernel: downsample_o.1
$region0: #{downsample_o.1}
  #allocation0 [shape = 'u32[]', space=smem, size = 0x4, offset = 0x4, fixed_abs, tag = 'smem constant byte address 0x4 - core index']
  #allocation1 [shape = 'u32[144,128]{1,0:T(1,128)}', space=vmem, size = 0x12000, scoped, tag = 'internal scratch']
  #allocation2 [shape = 'f32[32,128]{1,0:T(8,128)}', space=vmem, size = 0x4000, scoped, tag = 'scratch operand']
  %s0 = inlined_call_operand.vmem [shape: bf16[128,128], index: 0, kind: input, shape index: {}]
  %s1 = inlined_call_operand.vmem [shape: bf16[128,128], index: 1, kind: input, shape index: {}]
  %s2 = inlined_call_operand.vmem [shape: f32[1,128], index: 2, kind: input, shape index: {}]
  %s3 = inlined_call_operand.vmem [shape: bf16[128,128], index: 3, kind: output, shape index: {}]
  %s4 = sld [smem:[#allocation0]]
  $region53: #{downsample_o.1} parent=0
    _
  %s6 = ssub.s32 1, %s4
  %s7 = scalar_select 0, %s6, %s4
  loop: start=0, step=1, limit=6
  $region2: #{downsample_o.1} parent=0 // loop_pre_header
    _
  $region3: #{downsample_o.1} parent=0 // loop_header
    %s9 = sphi 0, %s13
    %p10 = scmp.ge.s32.totalorder %s9, 6
    %s16 = sphi 0, %s28
    %s17 = sphi 0, %s24
    %s18 = sphi 0, %s16
    %s19 = sphi 0, %s17
    %s20 = sphi 0, %s18
    %s21 = sphi 0, %s19
    %s33 = sphi 0, %s35
    %s36 = sphi 0, %s33
    %s37 = sphi 0, %s36
    %s53 = sphi 0, %s37
    %s59 = sphi 0, %s61
    %s62 = sphi 0, %s59
    %s63 = sphi 0, %s62
    %s79 = sphi 0, %s63
    %s83 = sphi 0, %s83
    %s85 = sphi 0, %s83
    %s86 = sphi 0, %s85
    %s100 = sphi 0, %s86
    %s106 = sphi 0, %s108
    %s109 = sphi 0, %s106
    %s110 = sphi 0, %s109
    %s126 = sphi 0, %s110
  $region4: #{downsample_o.1} parent=0 // loop_header_branch
    %12 = sbr.rel (%p10) target = $region8
  $region5: #{downsample_o.1} parent=0 // loop_body
    %s14 = ssub.s32 %s9, 1
    %s15 = ssub.s32 %s9, 2
    %s22 = sadd.s32 1, %s17
    %p23 = scmp.ge.s32.totalorder %s22, 1
    %s24 = scalar_select %p23, 0, %s22
    %s25 = sadd.s32 1, %s16
    %s26 = scalar_select %p23, %s25, %s16
    %p27 = scmp.ge.s32.totalorder %s26, 4
    %s28 = scalar_select %p27, 0, %s26
    %s29 = ssub.s32 %s16, %s28
    %s30 = ssub.s32 %s17, %s24
    %s31 = sor.u32 %s29, %s30
    %p32 = scmp.eq.s32.totalorder %s31, 0
    %s34 = sadd.s32 %s33, 1
    %s35 = scalar_select %p32, %s33, %s34
    %p38 = pneg %p32
    %p39 = scmp.eq.s32.totalorder %s9, 3
    %p40 = por %p38, %p39
    %p41 = scmp.ne.s32.totalorder %s33, %s36
    %p42 = scmp.eq.s32.totalorder %s9, 0
    %p43 = por %p41, %p42
    %p44 = scmp.ne.s32.totalorder %s33, %s36
    %p45 = scmp.eq.s32.totalorder %s14, 3
    %p46 = por %p44, %p45
    %p47 = scmp.ne.s32.totalorder %s36, %s37
    %p48 = scmp.eq.s32.totalorder %s14, 0
    %p49 = por %p47, %p48
    %p50 = scmp.ne.s32.totalorder %s36, %s37
    %p51 = scmp.eq.s32.totalorder %s15, 3
    %p52 = por %p50, %p51
    %p54 = scmp.ne.s32.totalorder %s37, %s53
    %p55 = scmp.eq.s32.totalorder %s15, 0
    %p56 = por %p54, %p55
    %s57 = ssub.s32 %s17, %s24
    %p58 = scmp.eq.s32.totalorder %s57, 0
    %s60 = sadd.s32 %s59, 1
    %s61 = scalar_select %p58, %s59, %s60
    %p64 = pneg %p58
    %p65 = scmp.eq.s32.totalorder %s9, 3
    %p66 = por %p64, %p65
    %p67 = scmp.ne.s32.totalorder %s59, %s62
    %p68 = scmp.eq.s32.totalorder %s9, 0
    %p69 = por %p67, %p68
    %p70 = scmp.ne.s32.totalorder %s59, %s62
    %p71 = scmp.eq.s32.totalorder %s14, 3
    %p72 = por %p70, %p71
    %p73 = scmp.ne.s32.totalorder %s62, %s63
    %p74 = scmp.eq.s32.totalorder %s14, 0
    %p75 = por %p73, %p74
    %p76 = scmp.ne.s32.totalorder %s62, %s63
    %p77 = scmp.eq.s32.totalorder %s15, 3
    %p78 = por %p76, %p77
    %p80 = scmp.ne.s32.totalorder %s63, %s79
    %p81 = scmp.eq.s32.totalorder %s15, 0
    %p82 = por %p80, %p81
    %s84 = sadd.s32 %s83, 1
    %p87 = scmp.eq.s32.totalorder %s9, 3
    %p88 = scmp.ne.s32.totalorder %s83, %s85
    %p89 = scmp.eq.s32.totalorder %s9, 0
    %p90 = por %p88, %p89
    %p91 = scmp.ne.s32.totalorder %s83, %s85
    %p92 = scmp.eq.s32.totalorder %s14, 3
    %p93 = por %p91, %p92
    %p94 = scmp.ne.s32.totalorder %s85, %s86
    %p95 = scmp.eq.s32.totalorder %s14, 0
    %p96 = por %p94, %p95
    %p97 = scmp.ne.s32.totalorder %s85, %s86
    %p98 = scmp.eq.s32.totalorder %s15, 3
    %p99 = por %p97, %p98
    %p101 = scmp.ne.s32.totalorder %s86, %s100
    %p102 = scmp.eq.s32.totalorder %s15, 0
    %p103 = por %p101, %p102
    %s104 = ssub.s32 %s16, %s28
    %p105 = scmp.eq.s32.totalorder %s104, 0
    %s107 = sadd.s32 %s106, 1
    %s108 = scalar_select %p105, %s106, %s107
    %p111 = pneg %p105
    %p112 = scmp.eq.s32.totalorder %s9, 3
    %p113 = por %p111, %p112
    %p114 = scmp.ne.s32.totalorder %s106, %s109
    %p115 = scmp.eq.s32.totalorder %s9, 0
    %p116 = por %p114, %p115
    %p117 = scmp.ne.s32.totalorder %s106, %s109
    %p118 = scmp.eq.s32.totalorder %s14, 3
    %p119 = por %p117, %p118
    %p120 = scmp.ne.s32.totalorder %s109, %s110
    %p121 = scmp.eq.s32.totalorder %s14, 0
    %p122 = por %p120, %p121
    %p123 = scmp.ne.s32.totalorder %s109, %s110
    %p124 = scmp.eq.s32.totalorder %s15, 3
    %p125 = por %p123, %p124
    %p127 = scmp.ne.s32.totalorder %s110, %s126
    %p128 = scmp.eq.s32.totalorder %s15, 0
    %p129 = por %p127, %p128
    %p130 = scmp.le.s32.totalorder 1, %s9
    %p131 = scmp.lt.s32.totalorder %s9, 5
    %p132 = pnand %p130, %p131
    %p133 = pneg %p132
    // Predicated region
    $region9: #{downsample_o.1} parent=5 // pred_check
      _
    $region10: #{downsample_o.1} parent=5 // pred_check_branch
      %135 = sbr.rel (%p132) target = $region12
    $region11: #{downsample_o.1} parent=5 // pred_region
      %s136 = ssub.s32 %s9, 1
      // Predicated region
      $region13: #{downsample_o.1} parent=11 // pred_check
        %p137 = pneg %p75
      $region14: #{downsample_o.1} parent=11 // pred_check_branch
        %139 = sbr.rel (%p137) target = $region16
      $region15: #{downsample_o.1} parent=11 // pred_region
        %s140 = smul.u32 16, %s19
        %p141 = scmp.lt.s32.totalorder %s140, 15
        %s142 = scalar_select %p141, %s140, 15
        %s143 = smul.addr %s142, 4
        %s144 = scalar_lea.vmem %s1, %s143
        %s145 = smul.u32 16, %s19
      $region16: #{downsample_o.1} parent=11 // pred_fallthru
        _
      // Predicated region
      $region17: #{downsample_o.1} parent=11 // pred_check
        %p146 = pneg %p96
      $region18: #{downsample_o.1} parent=11 // pred_check_branch
        %148 = sbr.rel (%p146) target = $region20
      $region19: #{downsample_o.1} parent=11 // pred_region
        _
      $region20: #{downsample_o.1} parent=11 // pred_fallthru
        _
    $region12: #{downsample_o.1} parent=5 // pred_fallthru
      _
    %p149 = scmp.lt.s32.totalorder %s9, 4
    // Predicated region
    $region21: #{downsample_o.1} parent=5 // pred_check
      %p150 = pneg %p149
    $region22: #{downsample_o.1} parent=5 // pred_check_branch
      %152 = sbr.rel (%p150) target = $region24
    $region23: #{downsample_o.1} parent=5 // pred_region
      // Predicated region
      $region25: #{downsample_o.1} parent=23 // pred_check
        %p153 = pneg %p43
      $region26: #{downsample_o.1} parent=23 // pred_check_branch
        %155 = sbr.rel (%p153) target = $region28
      $region27: #{downsample_o.1} parent=23 // pred_region
        %s156 = smul.u32 4, %s16
        %p157 = scmp.lt.s32.totalorder %s156, 15
        %s158 = scalar_select %p157, %s156, 15
        %p159 = scmp.lt.s32.totalorder %s17, 0
        %s160 = scalar_select %p159, %s17, 0
        %s161 = sadd.s32 %s160, %s158
        %s162 = smul.addr %s161, 4
        %s163 = scalar_lea.vmem %s0, %s162
        %s164 = smul.u32 4, %s16
      $region28: #{downsample_o.1} parent=23 // pred_fallthru
        _
    $region24: #{downsample_o.1} parent=5 // pred_fallthru
      _
    %p165 = scmp.le.s32.totalorder 1, %s9
    %p166 = scmp.lt.s32.totalorder %s9, 5
    %p167 = pnand %p165, %p166
    %p168 = pneg %p167
    // Predicated region
    $region29: #{downsample_o.1} parent=5 // pred_check
      _
    $region30: #{downsample_o.1} parent=5 // pred_check_branch
      %170 = sbr.rel (%p167) target = $region32
    $region31: #{downsample_o.1} parent=5 // pred_region
      %s171 = ssub.s32 %s9, 1
      %s172 = smul.u32 4, %s18
      %p173 = scmp.lt.s32.totalorder %s172, 15
      %s174 = scalar_select %p173, %s172, 15
      %p175 = scmp.lt.s32.totalorder %s19, 0
      %s176 = scalar_select %p175, %s19, 0
      %s177 = sadd.s32 %s176, %s174
      %s178 = smul.addr %s177, 4
      %s179 = scalar_lea.vmem %s0, %s178
      %p180 = pneg %p49
      %p181 = pneg %p46
      %s182 = smul.u32 16, %s19
      %p183 = scmp.lt.s32.totalorder %s182, 15
      %s184 = scalar_select %p183, %s182, 15
      %s185 = smul.addr %s184, 4
      %s186 = scalar_lea.vmem %s1, %s185
      %p187 = pneg %p75
      %p188 = pneg %p72
      %p189 = pneg %p96
      %p190 = pneg %p93
      %p191 = pneg %p122
      %p192 = pneg %p119
      %s193 = smul.u32 4, %s18
      %p194 = scmp.lt.s32.totalorder %s193, 15
      %s195 = scalar_select %p194, %s193, 15
      %s196 = smul.addr %s195, 4
      %s197 = scalar_lea.vmem %s3, %s196
      %s198 = smul.u32 4, %s18
      %p199 = scmp.lt.s32.totalorder %s198, 15
      %s200 = scalar_select %p199, %s198, 15
      %p201 = scmp.lt.s32.totalorder %s19, 0
      %s202 = scalar_select %p201, %s19, 0
      %s203 = sadd.s32 %s202, %s200
      %s204 = smul.addr %s203, 4
      %s205 = scalar_lea.vmem %s0, %s204
      %s206 = smul.u32 4, %s18
      %s207 = smul.u32 16, %s19
      %p208 = scmp.lt.s32.totalorder %s207, 15
      %s209 = scalar_select %p208, %s207, 15
      %s210 = smul.addr %s209, 4
      %s211 = scalar_lea.vmem %s1, %s210
      %s212 = smul.u32 16, %s19
      %s213 = smul.u32 4, %s18
      %p214 = scmp.lt.s32.totalorder %s213, 15
      %s215 = scalar_select %p214, %s213, 15
      %s216 = smul.addr %s215, 4
      %s217 = scalar_lea.vmem %s3, %s216
      %s218 = smul.u32 4, %s18
      %p220 = scmp.eq.s32.totalorder %s19, 0
      // Predicated region
      $region33: #{downsample_o.1} parent=31 // pred_check
        %p221 = pneg %p220
      $region34: #{downsample_o.1} parent=31 // pred_check_branch
        %223 = sbr.rel (%p221) target = $region36
      $region35: #{downsample_o.1} parent=31 // pred_region
        %224 = vst [vmem:[#allocation2] sm:$0xff] 0.0
        %225 = vst [vmem:[#allocation2 + $0x8] sm:$0xff] 0.0
        %226 = vst [vmem:[#allocation2 + $0x10] sm:$0xff] 0.0
        %227 = vst [vmem:[#allocation2 + $0x18] sm:$0xff] 0.0
      $region36: #{downsample_o.1} parent=31 // pred_fallthru
        _
      %v228 = vld [vmem:[#allocation2] sm:$0xff]
      %v229 = vld [vmem:[#allocation2 + $0x8] sm:$0xff]
      %v230 = vld [vmem:[#allocation2 + $0x10] sm:$0xff]
      %v231 = vld [vmem:[#allocation2 + $0x18] sm:$0xff]
      %v232 = vld [vmem:[%s205] sm:$0xf]
      %v233 = vld [vmem:[%s205 + $0x4] sm:$0xf]
      %v234 = vld [vmem:[%s205 + $0x8] sm:$0xf]
      %v235 = vld [vmem:[%s205 + $0xc] sm:$0xf]
      %v236 = vld [vmem:[%s211] sm:$0xf]
      %v237 = vld [vmem:[%s211 + $0x4] sm:$0xf]
      %v238 = vld [vmem:[%s211 + $0x8] sm:$0xf]
      %v239 = vld [vmem:[%s211 + $0xc] sm:$0xf]
      %v240 = vld [vmem:[%s211 + $0x10] sm:$0xf]
      %v241 = vld [vmem:[%s211 + $0x14] sm:$0xf]
      %v242 = vld [vmem:[%s211 + $0x18] sm:$0xf]
      %v243 = vld [vmem:[%s211 + $0x1c] sm:$0xf]
      %v244 = vld [vmem:[%s211 + $0x20] sm:$0xf]
      %v245 = vld [vmem:[%s211 + $0x24] sm:$0xf]
      %v246 = vld [vmem:[%s211 + $0x28] sm:$0xf]
      %v247 = vld [vmem:[%s211 + $0x2c] sm:$0xf]
      %v248 = vld [vmem:[%s211 + $0x30] sm:$0xf]
      %v249 = vld [vmem:[%s211 + $0x34] sm:$0xf]
      %v250 = vld [vmem:[%s211 + $0x38] sm:$0xf]
      %v251 = vld [vmem:[%s211 + $0x3c] sm:$0xf]
      %v256 = vunpack.c.l.b16 %v232
      %v257 = vunpack.c.l.b16 %v233
      %v258 = vunpack.c.l.b16 %v234
      %v259 = vunpack.c.l.b16 %v235
      %v260 = vpack.c.b16 %v257, %v256
      %v261 = vpack.c.b16 %v259, %v258
      %v280 = vunpack.c.l.b16 %v236
      %v281 = vunpack.c.l.b16 %v237
      %v282 = vunpack.c.l.b16 %v238
      %v283 = vunpack.c.l.b16 %v239
      %v284 = vunpack.c.l.b16 %v240
      %v285 = vunpack.c.l.b16 %v241
      %v286 = vunpack.c.l.b16 %v242
      %v287 = vunpack.c.l.b16 %v243
      %v288 = vunpack.c.l.b16 %v244
      %v289 = vunpack.c.l.b16 %v245
      %v290 = vunpack.c.l.b16 %v246
      %v291 = vunpack.c.l.b16 %v247
      %v292 = vunpack.c.l.b16 %v248
      %v293 = vunpack.c.l.b16 %v249
      %v294 = vunpack.c.l.b16 %v250
      %v295 = vunpack.c.l.b16 %v251
      %v296 = vpack.c.b16 %v281, %v280
      %v297 = vpack.c.b16 %v283, %v282
      %v298 = vpack.c.b16 %v285, %v284
      %v299 = vpack.c.b16 %v287, %v286
      %v300 = vpack.c.b16 %v289, %v288
      %v301 = vpack.c.b16 %v291, %v290
      %v302 = vpack.c.b16 %v293, %v292
      %v303 = vpack.c.b16 %v295, %v294
      %312 = vmatprep.subr.bf16.mxu0 0
      %313 = vmatpush1.bf16.msra.mxu0 %v296
      %314 = vmatprep.subr.bf16.mxu0 0
      %315 = vmatpush1.bf16.msra.mxu0 %v297
      %316 = vmatprep.subr.bf16.mxu0 0
      %317 = vmatpush1.bf16.msra.mxu0 %v298
      %318 = vmatprep.subr.bf16.mxu0 0
      %319 = vmatpush1.bf16.msra.mxu0 %v299
      %320 = vmatprep.subr.bf16.mxu0 0
      %321 = vmatpush1.bf16.msra.mxu0 %v300
      %322 = vmatprep.subr.bf16.mxu0 0
      %323 = vmatpush1.bf16.msra.mxu0 %v301
      %324 = vmatprep.subr.bf16.mxu0 0
      %325 = vmatpush1.bf16.msra.mxu0 %v302
      %326 = vmatprep.subr.bf16.mxu0 0
      %327 = vmatpush1.bf16.msra.mxu0 %v303
      %328 = vmatprep.subr.bf16.mxu0 0
      %329 = vmatpush1.bf16.msra.mxu0 0
      %330 = vmatprep.subr.bf16.mxu0 0
      %331 = vmatpush1.bf16.msra.mxu0 0
      %332 = vmatprep.subr.bf16.mxu0 0
      %333 = vmatpush1.bf16.msra.mxu0 0
      %334 = vmatprep.subr.bf16.mxu0 0
      %335 = vmatpush1.bf16.msra.mxu0 0
      %336 = vmatprep.subr.bf16.mxu0 0
      %337 = vmatpush1.bf16.msra.mxu0 0
      %338 = vmatprep.subr.bf16.mxu0 0
      %339 = vmatpush1.bf16.msra.mxu0 0
      %340 = vmatprep.subr.bf16.mxu0 0
      %341 = vmatpush1.bf16.msra.mxu0 0
      %342 = vmatprep.subr.bf16.mxu0 0
      %343 = vmatpush1.bf16.msra.mxu0 0
      %344 = vmatprep.mubr.bf16.mxu0 0
      %345 = vmatmul.mubr.bf16.gmra.mrb[0].mxu0 %v260
      %v346 = vpop.f32.mrb[0].mxu0
      %v347 = vadd.f32 0.0, %v346
      %v348 = vpop.f32.mrb[0].mxu0
      %v349 = vpop.f32.mrb[0].mxu0
      %v350 = vadd.f32 0.0, %v349
      %v351 = vpop.f32.mrb[0].mxu0
      %352 = vmatprep.mubr.bf16.mxu0 0
      %353 = vmatmul.mubr.bf16.gmra.mrb[0].mxu0 %v261
      %v354 = vpop.f32.mrb[0].mxu0
      %v355 = vadd.f32 0.0, %v354
      %v356 = vpop.f32.mrb[0].mxu0
      %v357 = vpop.f32.mrb[0].mxu0
      %v358 = vadd.f32 0.0, %v357
      %v359 = vpop.f32.mrb[0].mxu0
      %360 = vdwg.mxu0
      %v361 = vadd.f32 %v228, %v347
      %v362 = vadd.f32 %v229, %v350
      %v363 = vadd.f32 %v230, %v355
      %v364 = vadd.f32 %v231, %v358
      %365 = vst [vmem:[#allocation2] sm:$0xff] %v361
      %366 = vst [vmem:[#allocation2 + $0x8] sm:$0xff] %v362
      %367 = vst [vmem:[#allocation2 + $0x10] sm:$0xff] %v363
      %368 = vst [vmem:[#allocation2 + $0x18] sm:$0xff] %v364
      // Predicated region
      $region37: #{downsample_o.1} parent=31 // pred_check
        %p369 = pneg %p220
      $region38: #{downsample_o.1} parent=31 // pred_check_branch
        %371 = sbr.rel (%p369) target = $region40
      $region39: #{downsample_o.1} parent=31 // pred_region
        %v372 = vld [vmem:[#allocation2] sm:$0xff]
        %v373 = vld [vmem:[#allocation2 + $0x8] sm:$0xff]
        %v374 = vld [vmem:[#allocation2 + $0x10] sm:$0xff]
        %v375 = vld [vmem:[#allocation2 + $0x18] sm:$0xff]
        %v376 = vld [vmem:[%s2] sm:$0x1]
        %v378 = vlaneseq
        %v379 = vshrl.u32 %v378, 7
        %v380 = vsub.s32 0, %v379
        %v381 = vrot.slane %v376, %v380
        %v383 = vadd.f32 %v372, %v381
        %v384 = vadd.f32 %v373, %v381
        %v385 = vadd.f32 %v374, %v381
        %v386 = vadd.f32 %v375, %v381
        %v387 = vpack.c.bf16 %v384, %v383
        %v388 = vpack.c.bf16 %v386, %v385
        %v391 = vunpack.c.l.b16 %v387
        %v392 = vunpack.c.h.b16 %v387
        %v393 = vunpack.c.l.b16 %v388
        %v394 = vunpack.c.h.b16 %v388
        %v395 = vpack.c.b16 %v391, %v391
        %v396 = vpack.c.b16 %v392, %v392
        %v397 = vpack.c.b16 %v393, %v393
        %v398 = vpack.c.b16 %v394, %v394
        %403 = vst [vmem:[%s217] sm:$0xf] %v395
        %404 = vst [vmem:[%s217 + $0x4] sm:$0xf] %v396
        %405 = vst [vmem:[%s217 + $0x8] sm:$0xf] %v397
        %406 = vst [vmem:[%s217 + $0xc] sm:$0xf] %v398
      $region40: #{downsample_o.1} parent=31 // pred_fallthru
        _
      %s407 = smul.u32 4, %s18
      %p408 = scmp.lt.s32.totalorder %s407, 15
      %s409 = scalar_select %p408, %s407, 15
      %s410 = smul.addr %s409, 4
      %s411 = scalar_lea.vmem %s3, %s410
      // Predicated region
      $region41: #{downsample_o.1} parent=31 // pred_check
        %p412 = pneg %p119
      $region42: #{downsample_o.1} parent=31 // pred_check_branch
        %414 = sbr.rel (%p412) target = $region44
      $region43: #{downsample_o.1} parent=31 // pred_region
        %s415 = smul.u32 4, %s18
      $region44: #{downsample_o.1} parent=31 // pred_fallthru
        _
    $region32: #{downsample_o.1} parent=5 // pred_fallthru
      _
    %p416 = scmp.le.s32.totalorder 2, %s9
    // Predicated region
    $region45: #{downsample_o.1} parent=5 // pred_check
      %p417 = pneg %p416
    $region46: #{downsample_o.1} parent=5 // pred_check_branch
      %419 = sbr.rel (%p417) target = $region48
    $region47: #{downsample_o.1} parent=5 // pred_region
      %s420 = ssub.s32 %s9, 2
      // Predicated region
      $region49: #{downsample_o.1} parent=47 // pred_check
        %p421 = pneg %p125
      $region50: #{downsample_o.1} parent=47 // pred_check_branch
        %423 = sbr.rel (%p421) target = $region52
      $region51: #{downsample_o.1} parent=47 // pred_region
        %s424 = smul.u32 4, %s20
        %p425 = scmp.lt.s32.totalorder %s424, 15
        %s426 = scalar_select %p425, %s424, 15
        %s427 = smul.addr %s426, 4
        %s428 = scalar_lea.vmem %s3, %s427
      $region52: #{downsample_o.1} parent=47 // pred_fallthru
        _
    $region48: #{downsample_o.1} parent=5 // pred_fallthru
      _
  $region6: #{downsample_o.1} parent=0 // loop_footer
    %s13 = sadd.s32 1, %s9
  $region7: #{downsample_o.1} parent=0 // loop_footer_branch
    %8 = sbr.rel target = $region3
  $region8: #{downsample_o.1} parent=0 // loop_exit
    _

</llo_original>
